<compile_context>
chip_gen: v5e
topology: v5e:2x2
jax: 0.10.0
libtpu: 0.0.40
codegen_flags: <defaults>
</compile_context>

<pallas_src>
import jax
import jax.numpy as jnp
from jax.experimental import pallas as pl
from jax.experimental.pallas import tpu as pltpu


def _inference_kernel(x_ref, w1_ref, b1_ref, w2_ref, b2_ref,
                      w3_ref, b3_ref, w4_ref, b4_ref, rho_ref):
    # x_ref: (TB, S, Fp) block -> flatten set+batch rows into one big matmul.
    tb, s, fp = x_ref.shape
    x2 = x_ref[...].reshape(tb * s, fp)                       # (TB*S, Fp)

    # eta_net: Linear -> ReLU -> Linear -> ReLU (single MXU calls over TB*S rows)
    h = jnp.dot(x2, w1_ref[...], preferred_element_type=jnp.float32) + b1_ref[...]
    h = jnp.maximum(h, 0.0).astype(w2_ref.dtype)
    h = jnp.dot(h, w2_ref[...], preferred_element_type=jnp.float32) + b2_ref[...]
    h = jnp.maximum(h, 0.0)                                   # (TB*S, Hp) f32

    # mean over the set dimension: sum (XLU) * precomputed 1/S constant.
    m = h.reshape(tb, s, -1).sum(axis=1) * (1.0 / s)          # (TB, Hp)
    m = m.astype(w3_ref.dtype)

    # rho_net: Linear -> ReLU -> Linear -> ReLU, batched over all TB rows.
    r = jnp.dot(m, w3_ref[...], preferred_element_type=jnp.float32) + b3_ref[...]
    r = jnp.maximum(r, 0.0).astype(w4_ref.dtype)
    r = jnp.dot(r, w4_ref[...], preferred_element_type=jnp.float32) + b4_ref[...]
    r = jnp.maximum(r, 0.0)                                   # (TB, 2Zp)

    rho_ref[...] = r.astype(rho_ref.dtype)                    # lane-dense store


def _round_up(n, m):
    return (n + m - 1) // m * m


def _batch_tile(b):
    # One grid step for small batches; multiples of 8 shard cleanly across
    # TensorCores (v7x) for large batches while satisfying the (8,128) rule.
    if b <= 128 or b % 8 != 0:
        return b
    tb = 128
    while b % tb:
        tb -= 8
    return tb


def inference_network(x, params, z_dim, *, compute_dtype=jnp.float32):
    """x: [B, S, F] float32. Returns (mean, logvar), each [B, z_dim] float32.

    compute_dtype=jnp.bfloat16 casts x and weights to bf16 (v6e/v7x MXU-native)
    while keeping f32 accumulation and f32 biases/outputs.
    """
    B, S, F = x.shape
    H = params["w1"].shape[1]
    Fp = _round_up(F, 128)
    Hp = _round_up(H, 128)
    Op = _round_up(2 * z_dim, 128)

    def pad2(a, rows, cols):
        return jnp.pad(a, ((0, rows - a.shape[0]), (0, cols - a.shape[1])))

    # Zero-padding is numerically exact for Linear+ReLU (ReLU(0)=0 and padded
    # weight rows/cols are zero), so padded lanes stay zero end to end.
    w1 = pad2(params["w1"], Fp, Hp).astype(compute_dtype)
    w2 = pad2(params["w2"], Hp, Hp).astype(compute_dtype)
    w3 = pad2(params["w3"], Hp, Hp).astype(compute_dtype)
    w4 = pad2(params["w4"], Hp, Op).astype(compute_dtype)
    b1 = pad2(params["b1"], 1, Hp).astype(jnp.float32)
    b2 = pad2(params["b2"], 1, Hp).astype(jnp.float32)
    b3 = pad2(params["b3"], 1, Hp).astype(jnp.float32)
    b4 = pad2(params["b4"], 1, Op).astype(jnp.float32)
    xp = jnp.pad(x, ((0, 0), (0, 0), (0, Fp - F))).astype(compute_dtype)

    tb = _batch_tile(B)
    grid = (B // tb,)

    def wspec(shape):
        # Grid-invariant index_map: weight/bias blocks stay resident in VMEM.
        return pl.BlockSpec(shape, lambda i: (0, 0))

    in_specs = [
        pl.BlockSpec((tb, S, Fp), lambda i: (i, 0, 0)),   # x: one batch tile / step
        wspec((Fp, Hp)), wspec((1, Hp)),                  # w1, b1
        wspec((Hp, Hp)), wspec((1, Hp)),                  # w2, b2
        wspec((Hp, Hp)), wspec((1, Hp)),                  # w3, b3
        wspec((Hp, Op)), wspec((1, Op)),                  # w4, b4
    ]
    out_specs = pl.BlockSpec((tb, Op), lambda i: (i, 0))  # lane-dense 128-wide output
    out_shape = jax.ShapeDtypeStruct((B, Op), jnp.float32)

    rho = pl.pallas_call(
        _inference_kernel,
        grid=grid,
        in_specs=in_specs,
        out_specs=out_specs,
        out_shape=out_shape,
        compiler_params=pltpu.CompilerParams(
            dimension_semantics=("parallel",)),
    )(xp, w1, b1, w2, b2, w3, b3, w4, b4)

    # Split mean/logvar (and drop lane padding) in the wrapper.
    return rho[:, :z_dim], rho[:, z_dim:2 * z_dim]


def _init_params(key, n_features, hidden_dim, z_dim):
    """Deterministic synthetic init (PyTorch-Linear-style uniform bounds)."""
    ks = jax.random.split(key, 8)

    def lin(kw, kb, fan_in, fan_out):
        bound = 1.0 / jnp.sqrt(fan_in)
        w = jax.random.uniform(kw, (fan_in, fan_out), jnp.float32, -bound, bound)
        b = jax.random.uniform(kb, (1, fan_out), jnp.float32, -bound, bound)
        return w, b

    w1, b1 = lin(ks[0], ks[1], n_features, hidden_dim)
    w2, b2 = lin(ks[2], ks[3], hidden_dim, hidden_dim)
    w3, b3 = lin(ks[4], ks[5], hidden_dim, hidden_dim)
    w4, b4 = lin(ks[6], ks[7], hidden_dim, 2 * z_dim)
    return dict(w1=w1, b1=b1, w2=w2, b2=b2, w3=w3, b3=b3, w4=w4, b4=b4)


def _reference(x, p, z_dim):
    h = jnp.maximum(x @ p["w1"] + p["b1"], 0.0)
    h = jnp.maximum(h @ p["w2"] + p["b2"], 0.0)
    m = jnp.mean(h, axis=1)
    r = jnp.maximum(m @ p["w3"] + p["b3"], 0.0)
    r = jnp.maximum(r @ p["w4"] + p["b4"], 0.0)
    return r[:, :z_dim], r[:, z_dim:]


if __name__ == "__main__":
    B, S = 2, 8                       # batch, set size
    n_features, hidden_dim, z_dim = 32, 32, 8

    key = jax.random.PRNGKey(0)
    kx, kp = jax.random.split(key)
    x = jax.random.normal(kx, (B, S, n_features), jnp.float32)
    params = _init_params(kp, n_features, hidden_dim, z_dim)

    mean, logvar = inference_network(x, params, z_dim)
    jax.block_until_ready((mean, logvar))

    ref_mean, ref_logvar = _reference(x, params, z_dim)
    assert jnp.allclose(mean, ref_mean, atol=1e-4, rtol=1e-4)
    assert jnp.allclose(logvar, ref_logvar, atol=1e-4, rtol=1e-4)

    print("KERNEL_OK")
</pallas_src>

<mosaic_0001>
module attributes {stable_mosaic.version = 11 : i64} {
  func.func @_inference_kernel(%arg0: i32, %arg1: memref<2x8x128xf32, #tpu.memory_space<vmem>>, %arg2: memref<128x128xf32, #tpu.memory_space<vmem>>, %arg3: memref<1x128xf32, #tpu.memory_space<vmem>>, %arg4: memref<128x128xf32, #tpu.memory_space<vmem>>, %arg5: memref<1x128xf32, #tpu.memory_space<vmem>>, %arg6: memref<128x128xf32, #tpu.memory_space<vmem>>, %arg7: memref<1x128xf32, #tpu.memory_space<vmem>>, %arg8: memref<128x128xf32, #tpu.memory_space<vmem>>, %arg9: memref<1x128xf32, #tpu.memory_space<vmem>>, %arg10: memref<2x128xf32, #tpu.memory_space<vmem>>) attributes {dimension_semantics = [#tpu.dimension_semantics<parallel>], iteration_bounds = array<i64: 1>, scalar_prefetch = 0 : i64, scratch_operands = 0 : i64, tpu.core_type = #tpu.core_type<tc>, window_params = [{transform_indices = @transform_0, window_bounds = array<i64: 2, 8, 128>}, {pipeline_mode = #tpu.pipeline_mode<synchronous>, transform_indices = @transform_1, window_bounds = array<i64: 128, 128>}, {pipeline_mode = #tpu.pipeline_mode<synchronous>, transform_indices = @transform_2, window_bounds = array<i64: 1, 128>}, {pipeline_mode = #tpu.pipeline_mode<synchronous>, transform_indices = @transform_3, window_bounds = array<i64: 128, 128>}, {pipeline_mode = #tpu.pipeline_mode<synchronous>, transform_indices = @transform_4, window_bounds = array<i64: 1, 128>}, {pipeline_mode = #tpu.pipeline_mode<synchronous>, transform_indices = @transform_5, window_bounds = array<i64: 128, 128>}, {pipeline_mode = #tpu.pipeline_mode<synchronous>, transform_indices = @transform_6, window_bounds = array<i64: 1, 128>}, {pipeline_mode = #tpu.pipeline_mode<synchronous>, transform_indices = @transform_7, window_bounds = array<i64: 128, 128>}, {pipeline_mode = #tpu.pipeline_mode<synchronous>, transform_indices = @transform_8, window_bounds = array<i64: 1, 128>}, {transform_indices = @transform_9, window_bounds = array<i64: 2, 128>}]} {
    %c0 = arith.constant 0 : index
    %c0_0 = arith.constant 0 : index
    %c0_1 = arith.constant 0 : index
    %0 = vector.load %arg1[%c0, %c0_0, %c0_1] : memref<2x8x128xf32, #tpu.memory_space<vmem>>, vector<2x8x128xf32>
    %1 = vector.shape_cast %0 : vector<2x8x128xf32> to vector<16x128xf32>
    %c0_2 = arith.constant 0 : index
    %c0_3 = arith.constant 0 : index
    %2 = vector.load %arg2[%c0_2, %c0_3] : memref<128x128xf32, #tpu.memory_space<vmem>>, vector<128x128xf32>
    %cst = arith.constant dense<0.000000e+00> : vector<16x128xf32>
    %3 = tpu.matmul %1, %2, %cst {dimension_numbers = #tpu.dot_dimension_numbers<[1], [0], [0], [1], [0, 0, 1, 1], [], []>} : vector<16x128xf32>, vector<128x128xf32>, vector<16x128xf32> -> vector<16x128xf32>
    %c0_4 = arith.constant 0 : index
    %c0_5 = arith.constant 0 : index
    %4 = vector.load %arg3[%c0_4, %c0_5] : memref<1x128xf32, #tpu.memory_space<vmem>>, vector<1x128xf32>
    %5 = vector.broadcast %4 : vector<1x128xf32> to vector<16x128xf32>
    %6 = arith.addf %3, %5 : vector<16x128xf32>
    %cst_6 = arith.constant 0.000000e+00 : f32
    %7 = vector.broadcast %cst_6 : f32 to vector<16x128xf32>
    %8 = arith.maximumf %6, %7 : vector<16x128xf32>
    %c0_7 = arith.constant 0 : index
    %c0_8 = arith.constant 0 : index
    %9 = vector.load %arg4[%c0_7, %c0_8] : memref<128x128xf32, #tpu.memory_space<vmem>>, vector<128x128xf32>
    %cst_9 = arith.constant dense<0.000000e+00> : vector<16x128xf32>
    %10 = tpu.matmul %8, %9, %cst_9 {dimension_numbers = #tpu.dot_dimension_numbers<[1], [0], [0], [1], [0, 0, 1, 1], [], []>} : vector<16x128xf32>, vector<128x128xf32>, vector<16x128xf32> -> vector<16x128xf32>
    %c0_10 = arith.constant 0 : index
    %c0_11 = arith.constant 0 : index
    %11 = vector.load %arg5[%c0_10, %c0_11] : memref<1x128xf32, #tpu.memory_space<vmem>>, vector<1x128xf32>
    %12 = vector.broadcast %11 : vector<1x128xf32> to vector<16x128xf32>
    %13 = arith.addf %10, %12 : vector<16x128xf32>
    %cst_12 = arith.constant 0.000000e+00 : f32
    %14 = vector.broadcast %cst_12 : f32 to vector<16x128xf32>
    %15 = arith.maximumf %13, %14 : vector<16x128xf32>
    %16 = vector.shape_cast %15 : vector<16x128xf32> to vector<2x8x128xf32>
    %cst_13 = arith.constant dense<0.000000e+00> : vector<2x128xf32>
    %17 = vector.multi_reduction <add>, %16, %cst_13 [1] : vector<2x8x128xf32> to vector<2x128xf32>
    %cst_14 = arith.constant 1.250000e-01 : f32
    %18 = vector.broadcast %cst_14 : f32 to vector<2x128xf32>
    %19 = arith.mulf %17, %18 : vector<2x128xf32>
    %c0_15 = arith.constant 0 : index
    %c0_16 = arith.constant 0 : index
    %20 = vector.load %arg6[%c0_15, %c0_16] : memref<128x128xf32, #tpu.memory_space<vmem>>, vector<128x128xf32>
    %cst_17 = arith.constant dense<0.000000e+00> : vector<2x128xf32>
    %21 = tpu.matmul %19, %20, %cst_17 {dimension_numbers = #tpu.dot_dimension_numbers<[1], [0], [0], [1], [0, 0, 1, 1], [], []>} : vector<2x128xf32>, vector<128x128xf32>, vector<2x128xf32> -> vector<2x128xf32>
    %c0_18 = arith.constant 0 : index
    %c0_19 = arith.constant 0 : index
    %22 = vector.load %arg7[%c0_18, %c0_19] : memref<1x128xf32, #tpu.memory_space<vmem>>, vector<1x128xf32>
    %23 = vector.broadcast %22 : vector<1x128xf32> to vector<2x128xf32>
    %24 = arith.addf %21, %23 : vector<2x128xf32>
    %cst_20 = arith.constant 0.000000e+00 : f32
    %25 = vector.broadcast %cst_20 : f32 to vector<2x128xf32>
    %26 = arith.maximumf %24, %25 : vector<2x128xf32>
    %c0_21 = arith.constant 0 : index
    %c0_22 = arith.constant 0 : index
    %27 = vector.load %arg8[%c0_21, %c0_22] : memref<128x128xf32, #tpu.memory_space<vmem>>, vector<128x128xf32>
    %cst_23 = arith.constant dense<0.000000e+00> : vector<2x128xf32>
    %28 = tpu.matmul %26, %27, %cst_23 {dimension_numbers = #tpu.dot_dimension_numbers<[1], [0], [0], [1], [0, 0, 1, 1], [], []>} : vector<2x128xf32>, vector<128x128xf32>, vector<2x128xf32> -> vector<2x128xf32>
    %c0_24 = arith.constant 0 : index
    %c0_25 = arith.constant 0 : index
    %29 = vector.load %arg9[%c0_24, %c0_25] : memref<1x128xf32, #tpu.memory_space<vmem>>, vector<1x128xf32>
    %30 = vector.broadcast %29 : vector<1x128xf32> to vector<2x128xf32>
    %31 = arith.addf %28, %30 : vector<2x128xf32>
    %cst_26 = arith.constant 0.000000e+00 : f32
    %32 = vector.broadcast %cst_26 : f32 to vector<2x128xf32>
    %33 = arith.maximumf %31, %32 : vector<2x128xf32>
    %c0_27 = arith.constant 0 : index
    %c0_28 = arith.constant 0 : index
    %34 = vector.load %arg10[%c0_27, %c0_28] : memref<2x128xf32, #tpu.memory_space<vmem>>, vector<2x128xf32>
    tpu.vector_store %arg10[%c0_27, %c0_28], %33 {strides = array<i32>} : memref<2x128xf32, #tpu.memory_space<vmem>>, vector<2x128xf32>,
    return
  }
  func.func @transform_0(%arg0: i32) -> (i32, i32, i32) {
    %c0_i32 = arith.constant 0 : i32
    %c0_i32_0 = arith.constant 0 : i32
    %c0_i32_1 = arith.constant 0 : i32
    return %arg0, %c0_i32, %c0_i32_0 : i32, i32, i32
  }
  func.func @transform_1(%arg0: i32) -> (i32, i32) {
    %c0_i32 = arith.constant 0 : i32
    %c0_i32_0 = arith.constant 0 : i32
    %c0_i32_1 = arith.constant 0 : i32
    return %c0_i32, %c0_i32_0 : i32, i32
  }
  func.func @transform_2(%arg0: i32) -> (i32, i32) {
    %c0_i32 = arith.constant 0 : i32
    %c0_i32_0 = arith.constant 0 : i32
    %c0_i32_1 = arith.constant 0 : i32
    return %c0_i32, %c0_i32_0 : i32, i32
  }
  func.func @transform_3(%arg0: i32) -> (i32, i32) {
    %c0_i32 = arith.constant 0 : i32
    %c0_i32_0 = arith.constant 0 : i32
    %c0_i32_1 = arith.constant 0 : i32
    return %c0_i32, %c0_i32_0 : i32, i32
  }
  func.func @transform_4(%arg0: i32) -> (i32, i32) {
    %c0_i32 = arith.constant 0 : i32
    %c0_i32_0 = arith.constant 0 : i32
    %c0_i32_1 = arith.constant 0 : i32
    return %c0_i32, %c0_i32_0 : i32, i32
  }
  func.func @transform_5(%arg0: i32) -> (i32, i32) {
    %c0_i32 = arith.constant 0 : i32
    %c0_i32_0 = arith.constant 0 : i32
    %c0_i32_1 = arith.constant 0 : i32
    return %c0_i32, %c0_i32_0 : i32, i32
  }
  func.func @transform_6(%arg0: i32) -> (i32, i32) {
    %c0_i32 = arith.constant 0 : i32
    %c0_i32_0 = arith.constant 0 : i32
    %c0_i32_1 = arith.constant 0 : i32
    return %c0_i32, %c0_i32_0 : i32, i32
  }
  func.func @transform_7(%arg0: i32) -> (i32, i32) {
    %c0_i32 = arith.constant 0 : i32
    %c0_i32_0 = arith.constant 0 : i32
    %c0_i32_1 = arith.constant 0 : i32
    return %c0_i32, %c0_i32_0 : i32, i32
  }
  func.func @transform_8(%arg0: i32) -> (i32, i32) {
    %c0_i32 = arith.constant 0 : i32
    %c0_i32_0 = arith.constant 0 : i32
    %c0_i32_1 = arith.constant 0 : i32
    return %c0_i32, %c0_i32_0 : i32, i32
  }
  func.func @transform_9(%arg0: i32) -> (i32, i32) {
    %c0_i32 = arith.constant 0 : i32
    %c0_i32_0 = arith.constant 0 : i32
    return %arg0, %c0_i32 : i32, i32
  }
}

</mosaic_0001>

<llo_original>
// kernel: tpu_custom_call.1
$region0: #{tpu_custom_call.1}
  #allocation0 [shape = 'u32[]', space=smem, size = 0x4, offset = 0x4, fixed_abs, tag = 'smem constant byte address 0x4 - core index']
  #allocation1 [shape = 'u32[72,128]{1,0:T(1,128)}', space=vmem, size = 0x9000, scoped, tag = 'internal scratch']
  %s0 = inlined_call_operand.hbm [shape: f32[2,8,128], index: 0, kind: input, shape index: {}]
  %s1 = inlined_call_operand.hbm [shape: f32[128,128], index: 1, kind: input, shape index: {}]
  %s2 = inlined_call_operand.vmem [shape: f32[1,128], index: 2, kind: input, shape index: {}]
  %s3 = inlined_call_operand.hbm [shape: f32[128,128], index: 3, kind: input, shape index: {}]
  %s4 = inlined_call_operand.vmem [shape: f32[1,128], index: 4, kind: input, shape index: {}]
  %s5 = inlined_call_operand.hbm [shape: f32[128,128], index: 5, kind: input, shape index: {}]
  %s6 = inlined_call_operand.vmem [shape: f32[1,128], index: 6, kind: input, shape index: {}]
  %s7 = inlined_call_operand.hbm [shape: f32[128,128], index: 7, kind: input, shape index: {}]
  %s8 = inlined_call_operand.vmem [shape: f32[1,128], index: 8, kind: input, shape index: {}]
  %s9 = inlined_call_operand.hbm [shape: f32[2,128], index: 9, kind: output, shape index: {}]
  %s10 = sld [smem:[#allocation0]]
  $region66: #{tpu_custom_call.1} parent=0
    _
  %s12 = ssub.s32 1, %s10
  %s13 = scalar_select 0, %s12, %s10
  $region1: #{tpu_custom_call.1} parent=0
    #allocation2 [shape = 'u8[8192]{0}', space=vmem, size = 0x2000, scoped, tag = 'input window, operand 0, single buffered']
    #allocation3 [shape = 's32[1]{0}', space=sflag, size = 0x4, scoped, tag = 'scoped memory for tpu_custom_call.1']
    #allocation4 [shape = 's32[1]{0}', space=sflag, size = 0x4, scoped, tag = 'scoped memory for tpu_custom_call.1']
    #allocation5 [shape = 'u8[65536]{0}', space=vmem, size = 0x10000, scoped, tag = 'input window, operand 1, single buffered']
    #allocation6 [shape = 's32[1]{0}', space=sflag, size = 0x4, scoped, tag = 'scoped memory for tpu_custom_call.1']
    #allocation7 [shape = 'u8[65536]{0}', space=vmem, size = 0x10000, scoped, tag = 'input window, operand 3, single buffered']
    #allocation8 [shape = 'u8[65536]{0}', space=vmem, size = 0x10000, scoped, tag = 'input window, operand 5, single buffered']
    #allocation9 [shape = 's32[1]{0}', space=sflag, size = 0x4, scoped, tag = 'scoped memory for tpu_custom_call.1']
    #allocation10 [shape = 'u8[65536]{0}', space=vmem, size = 0x10000, scoped, tag = 'input window, operand 7, single buffered']
    #allocation11 [shape = 'u8[1024]{0}', space=vmem, size = 0x400, scoped, tag = 'output window, operand 0, single buffered']
    %14 = vsyncpa [#allocation3], 0
    %15 = vsyncpa [#allocation6], 0
    %16 = vsyncpa [#allocation9], 0
    %17 = vsyncpa [#allocation4], 0
    // Predicated region
    $region2: #{tpu_custom_call.1} parent=1 // pred_check
      _
    $region3: #{tpu_custom_call.1} parent=1 // pred_check_branch
      %19 = sbr.rel (0) target = $region5
    $region4: #{tpu_custom_call.1} parent=1 // pred_region
      %21 = vsyncadd [#allocation3], 0
      %s22 = sshll.u32 %s0, 4
      %s23 = int_to_ptr.hbm [resolvable:$true] %s22
      %s24 = sshll.u32 [#allocation2], 4
      %s25 = int_to_ptr.vmem [resolvable:$true] %s24
      %30 = dma.hbm_to_vmem [thread:$0]  %s23, 256, %s25, [#allocation3], 128, 128, 8
    $region5: #{tpu_custom_call.1} parent=1 // pred_fallthru
      _
    // Predicated region
    $region6: #{tpu_custom_call.1} parent=1 // pred_check
      _
    $region7: #{tpu_custom_call.1} parent=1 // pred_check_branch
      %32 = sbr.rel (0) target = $region9
    $region8: #{tpu_custom_call.1} parent=1 // pred_region
      %34 = vsyncadd [#allocation6], 0
      %s35 = sshll.u32 %s1, 4
      %s36 = int_to_ptr.hbm [resolvable:$true] %s35
      %s37 = sshll.u32 [#allocation5], 4
      %s38 = int_to_ptr.vmem [resolvable:$true] %s37
      %43 = dma.hbm_to_vmem [thread:$0]  %s36, 2048, %s38, [#allocation6], 128, 128, 8
    $region9: #{tpu_custom_call.1} parent=1 // pred_fallthru
      _
    // Predicated region
    $region10: #{tpu_custom_call.1} parent=1 // pred_check
      _
    $region11: #{tpu_custom_call.1} parent=1 // pred_check_branch
      %45 = sbr.rel (0) target = $region13
    $region12: #{tpu_custom_call.1} parent=1 // pred_region
      _
    $region13: #{tpu_custom_call.1} parent=1 // pred_fallthru
      _
    // Predicated region
    $region14: #{tpu_custom_call.1} parent=1 // pred_check
      _
    $region15: #{tpu_custom_call.1} parent=1 // pred_check_branch
      %47 = sbr.rel (0) target = $region17
    $region16: #{tpu_custom_call.1} parent=1 // pred_region
      %49 = vsyncadd [#allocation6], 0
      %s50 = sshll.u32 %s3, 4
      %s51 = int_to_ptr.hbm [resolvable:$true] %s50
      %s52 = sshll.u32 [#allocation7], 4
      %s53 = int_to_ptr.vmem [resolvable:$true] %s52
      %58 = dma.hbm_to_vmem [thread:$0]  %s51, 2048, %s53, [#allocation6], 128, 128, 8
    $region17: #{tpu_custom_call.1} parent=1 // pred_fallthru
      _
    // Predicated region
    $region18: #{tpu_custom_call.1} parent=1 // pred_check
      _
    $region19: #{tpu_custom_call.1} parent=1 // pred_check_branch
      %60 = sbr.rel (0) target = $region21
    $region20: #{tpu_custom_call.1} parent=1 // pred_region
      _
    $region21: #{tpu_custom_call.1} parent=1 // pred_fallthru
      _
    // Predicated region
    $region22: #{tpu_custom_call.1} parent=1 // pred_check
      _
    $region23: #{tpu_custom_call.1} parent=1 // pred_check_branch
      %62 = sbr.rel (0) target = $region25
    $region24: #{tpu_custom_call.1} parent=1 // pred_region
      %64 = vsyncadd [#allocation9], 0
      %s65 = sshll.u32 %s5, 4
      %s66 = int_to_ptr.hbm [resolvable:$true] %s65
      %s67 = sshll.u32 [#allocation8], 4
      %s68 = int_to_ptr.vmem [resolvable:$true] %s67
      %73 = dma.hbm_to_vmem [thread:$0]  %s66, 2048, %s68, [#allocation9], 128, 128, 8
    $region25: #{tpu_custom_call.1} parent=1 // pred_fallthru
      _
    // Predicated region
    $region26: #{tpu_custom_call.1} parent=1 // pred_check
      _
    $region27: #{tpu_custom_call.1} parent=1 // pred_check_branch
      %75 = sbr.rel (0) target = $region29
    $region28: #{tpu_custom_call.1} parent=1 // pred_region
      _
    $region29: #{tpu_custom_call.1} parent=1 // pred_fallthru
      _
    // Predicated region
    $region30: #{tpu_custom_call.1} parent=1 // pred_check
      _
    $region31: #{tpu_custom_call.1} parent=1 // pred_check_branch
      %77 = sbr.rel (0) target = $region33
    $region32: #{tpu_custom_call.1} parent=1 // pred_region
      %79 = vsyncadd [#allocation9], 0
      %s80 = sshll.u32 %s7, 4
      %s81 = int_to_ptr.hbm [resolvable:$true] %s80
      %s82 = sshll.u32 [#allocation10], 4
      %s83 = int_to_ptr.vmem [resolvable:$true] %s82
      %88 = dma.hbm_to_vmem [thread:$0]  %s81, 2048, %s83, [#allocation9], 128, 128, 8
    $region33: #{tpu_custom_call.1} parent=1 // pred_fallthru
      _
    // Predicated region
    $region34: #{tpu_custom_call.1} parent=1 // pred_check
      _
    $region35: #{tpu_custom_call.1} parent=1 // pred_check_branch
      %90 = sbr.rel (0) target = $region37
    $region36: #{tpu_custom_call.1} parent=1 // pred_region
      _
    $region37: #{tpu_custom_call.1} parent=1 // pred_fallthru
      _
    // Predicated region
    $region38: #{tpu_custom_call.1} parent=1 // pred_check
      _
    $region39: #{tpu_custom_call.1} parent=1 // pred_check_branch
      %92 = sbr.rel (0) target = $region41
    $region40: #{tpu_custom_call.1} parent=1 // pred_region
      %94 = dma.done [#allocation3], 256
    $region41: #{tpu_custom_call.1} parent=1 // pred_fallthru
      _
    // Predicated region
    $region42: #{tpu_custom_call.1} parent=1 // pred_check
      _
    $region43: #{tpu_custom_call.1} parent=1 // pred_check_branch
      %96 = sbr.rel (0) target = $region45
    $region44: #{tpu_custom_call.1} parent=1 // pred_region
      %98 = dma.done [#allocation6], 2048
    $region45: #{tpu_custom_call.1} parent=1 // pred_fallthru
      _
    // Predicated region
    $region46: #{tpu_custom_call.1} parent=1 // pred_check
      _
    $region47: #{tpu_custom_call.1} parent=1 // pred_check_branch
      %100 = sbr.rel (0) target = $region49
    $region48: #{tpu_custom_call.1} parent=1 // pred_region
      %102 = dma.done [#allocation6], 2048
    $region49: #{tpu_custom_call.1} parent=1 // pred_fallthru
      _
    // Predicated region
    $region50: #{tpu_custom_call.1} parent=1 // pred_check
      _
    $region51: #{tpu_custom_call.1} parent=1 // pred_check_branch
      %104 = sbr.rel (0) target = $region53
    $region52: #{tpu_custom_call.1} parent=1 // pred_region
      %106 = dma.done [#allocation9], 2048
    $region53: #{tpu_custom_call.1} parent=1 // pred_fallthru
      _
    // Predicated region
    $region54: #{tpu_custom_call.1} parent=1 // pred_check
      _
    $region55: #{tpu_custom_call.1} parent=1 // pred_check_branch
      %108 = sbr.rel (0) target = $region57
    $region56: #{tpu_custom_call.1} parent=1 // pred_region
      %110 = dma.done [#allocation9], 2048
    $region57: #{tpu_custom_call.1} parent=1 // pred_fallthru
      _
    %v111 = vld [vmem:[#allocation2] sm:$0xff]
    %v112 = vld [vmem:[#allocation2 + $0x8] sm:$0xff]
    %v113 = vld [vmem:[#allocation5] sm:$0xff]
    %v114 = vld [vmem:[#allocation5 + $0x8] sm:$0xff]
    %v115 = vld [vmem:[#allocation5 + $0x10] sm:$0xff]
    %v116 = vld [vmem:[#allocation5 + $0x18] sm:$0xff]
    %v117 = vld [vmem:[#allocation5 + $0x20] sm:$0xff]
    %v118 = vld [vmem:[#allocation5 + $0x28] sm:$0xff]
    %v119 = vld [vmem:[#allocation5 + $0x30] sm:$0xff]
    %v120 = vld [vmem:[#allocation5 + $0x38] sm:$0xff]
    %v121 = vld [vmem:[#allocation5 + $0x40] sm:$0xff]
    %v122 = vld [vmem:[#allocation5 + $0x48] sm:$0xff]
    %v123 = vld [vmem:[#allocation5 + $0x50] sm:$0xff]
    %v124 = vld [vmem:[#allocation5 + $0x58] sm:$0xff]
    %v125 = vld [vmem:[#allocation5 + $0x60] sm:$0xff]
    %v126 = vld [vmem:[#allocation5 + $0x68] sm:$0xff]
    %v127 = vld [vmem:[#allocation5 + $0x70] sm:$0xff]
    %v128 = vld [vmem:[#allocation5 + $0x78] sm:$0xff]
    %v129 = vld [vmem:[%s2] sm:$0x1]
    %v131 = vperm.slane %v129, 0
    %133 = vmatpush.msra.mxu0 %v128
    %134 = vmatpush.msra.mxu0 %v127
    %135 = vmatpush.msra.mxu0 %v126
    %136 = vmatpush.msra.mxu0 %v125
    %137 = vmatpush.msra.mxu0 %v124
    %138 = vmatpush.msra.mxu0 %v123
    %139 = vmatpush.msra.mxu0 %v122
    %140 = vmatpush.msra.mxu0 %v121
    %141 = vmatpush.msra.mxu0 %v120
    %142 = vmatpush.msra.mxu0 %v119
    %143 = vmatpush.msra.mxu0 %v118
    %144 = vmatpush.msra.mxu0 %v117
    %145 = vmatpush.msra.mxu0 %v116
    %146 = vmatpush.msra.mxu0 %v115
    %147 = vmatpush.msra.mxu0 %v114
    %148 = vmatpush.msra.mxu0 %v113
    %149 = vmatmul.f32.gmra.mxu0 %v111
    %v150 = vpop.f32.mrf.mxu0
    %v151 = vadd.f32 %v131, %v150
    %152 = vmatmul.f32.gmra.mxu0 %v112
    %v153 = vpop.f32.mrf.mxu0
    %v154 = vadd.f32 %v131, %v153
    %155 = vdwg.mxu0
    %v156 = vmax.f32 %v151, 0.0
    %v157 = vmax.f32 %v154, 0.0
    %v158 = vld [vmem:[#allocation7] sm:$0xff]
    %v159 = vld [vmem:[#allocation7 + $0x8] sm:$0xff]
    %v160 = vld [vmem:[#allocation7 + $0x10] sm:$0xff]
    %v161 = vld [vmem:[#allocation7 + $0x18] sm:$0xff]
    %v162 = vld [vmem:[#allocation7 + $0x20] sm:$0xff]
    %v163 = vld [vmem:[#allocation7 + $0x28] sm:$0xff]
    %v164 = vld [vmem:[#allocation7 + $0x30] sm:$0xff]
    %v165 = vld [vmem:[#allocation7 + $0x38] sm:$0xff]
    %v166 = vld [vmem:[#allocation7 + $0x40] sm:$0xff]
    %v167 = vld [vmem:[#allocation7 + $0x48] sm:$0xff]
    %v168 = vld [vmem:[#allocation7 + $0x50] sm:$0xff]
    %v169 = vld [vmem:[#allocation7 + $0x58] sm:$0xff]
    %v170 = vld [vmem:[#allocation7 + $0x60] sm:$0xff]
    %v171 = vld [vmem:[#allocation7 + $0x68] sm:$0xff]
    %v172 = vld [vmem:[#allocation7 + $0x70] sm:$0xff]
    %v173 = vld [vmem:[#allocation7 + $0x78] sm:$0xff]
    %v174 = vld [vmem:[%s4] sm:$0x1]
    %v176 = vperm.slane %v174, 0
    %178 = vmatpush.msra.mxu0 %v173
    %179 = vmatpush.msra.mxu0 %v172
    %180 = vmatpush.msra.mxu0 %v171
    %181 = vmatpush.msra.mxu0 %v170
    %182 = vmatpush.msra.mxu0 %v169
    %183 = vmatpush.msra.mxu0 %v168
    %184 = vmatpush.msra.mxu0 %v167
    %185 = vmatpush.msra.mxu0 %v166
    %186 = vmatpush.msra.mxu0 %v165
    %187 = vmatpush.msra.mxu0 %v164
    %188 = vmatpush.msra.mxu0 %v163
    %189 = vmatpush.msra.mxu0 %v162
    %190 = vmatpush.msra.mxu0 %v161
    %191 = vmatpush.msra.mxu0 %v160
    %192 = vmatpush.msra.mxu0 %v159
    %193 = vmatpush.msra.mxu0 %v158
    %194 = vmatmul.f32.gmra.mxu0 %v156
    %v195 = vpop.f32.mrf.mxu0
    %v196 = vadd.f32 %v176, %v195
    %197 = vmatmul.f32.gmra.mxu0 %v157
    %v198 = vpop.f32.mrf.mxu0
    %v199 = vadd.f32 %v176, %v198
    %200 = vdwg.mxu0
    %v201 = vmax.f32 %v196, 0.0
    %v202 = vmax.f32 %v199, 0.0
    %v203 = vrot.slane %v201, 4
    %v204 = vadd.f32 %v201, %v203
    %v205 = vrot.slane %v204, 2
    %v206 = vadd.f32 %v204, %v205
    %v207 = vrot.slane %v206, 1
    %v208 = vadd.f32 %v206, %v207
    %v209 = vrot.slane %v202, 4
    %v210 = vadd.f32 %v202, %v209
    %v211 = vrot.slane %v210, 2
    %v212 = vadd.f32 %v210, %v211
    %v213 = vrot.slane %v212, 1
    %v214 = vadd.f32 %v212, %v213
    %v215 = vmul.f32 %v208, 0.125
    %v216 = vmul.f32 %v214, 0.125
    %v217 = vld [vmem:[#allocation8] sm:$0xff]
    %v218 = vld [vmem:[#allocation8 + $0x8] sm:$0xff]
    %v219 = vld [vmem:[#allocation8 + $0x10] sm:$0xff]
    %v220 = vld [vmem:[#allocation8 + $0x18] sm:$0xff]
    %v221 = vld [vmem:[#allocation8 + $0x20] sm:$0xff]
    %v222 = vld [vmem:[#allocation8 + $0x28] sm:$0xff]
    %v223 = vld [vmem:[#allocation8 + $0x30] sm:$0xff]
    %v224 = vld [vmem:[#allocation8 + $0x38] sm:$0xff]
    %v225 = vld [vmem:[#allocation8 + $0x40] sm:$0xff]
    %v226 = vld [vmem:[#allocation8 + $0x48] sm:$0xff]
    %v227 = vld [vmem:[#allocation8 + $0x50] sm:$0xff]
    %v228 = vld [vmem:[#allocation8 + $0x58] sm:$0xff]
    %v229 = vld [vmem:[#allocation8 + $0x60] sm:$0xff]
    %v230 = vld [vmem:[#allocation8 + $0x68] sm:$0xff]
    %v231 = vld [vmem:[#allocation8 + $0x70] sm:$0xff]
    %v232 = vld [vmem:[#allocation8 + $0x78] sm:$0xff]
    %v233 = vld [vmem:[%s6] sm:$0x1]
    %v235 = vperm.slane %v233, 0
    %vm239 = vcmask 1041409
    %v240 = vsel %vm239, %v216, %v215
    %242 = vmatpush.msra.mxu0 %v232
    %243 = vmatpush.msra.mxu0 %v231
    %244 = vmatpush.msra.mxu0 %v230
    %245 = vmatpush.msra.mxu0 %v229
    %246 = vmatpush.msra.mxu0 %v228
    %247 = vmatpush.msra.mxu0 %v227
    %248 = vmatpush.msra.mxu0 %v226
    %249 = vmatpush.msra.mxu0 %v225
    %250 = vmatpush.msra.mxu0 %v224
    %251 = vmatpush.msra.mxu0 %v223
    %252 = vmatpush.msra.mxu0 %v222
    %253 = vmatpush.msra.mxu0 %v221
    %254 = vmatpush.msra.mxu0 %v220
    %255 = vmatpush.msra.mxu0 %v219
    %256 = vmatpush.msra.mxu0 %v218
    %257 = vmatpush.msra.mxu0 %v217
    %258 = vmatmul.f32.gmra.mxu0 %v240
    %v259 = vpop.f32.mrf.mxu0
    %v260 = vadd.f32 %v235, %v259
    %261 = vdwg.mxu0
    %v262 = vmax.f32 %v260, 0.0
    %v263 = vld [vmem:[#allocation10] sm:$0xff]
    %v264 = vld [vmem:[#allocation10 + $0x8] sm:$0xff]
    %v265 = vld [vmem:[#allocation10 + $0x10] sm:$0xff]
    %v266 = vld [vmem:[#allocation10 + $0x18] sm:$0xff]
    %v267 = vld [vmem:[#allocation10 + $0x20] sm:$0xff]
    %v268 = vld [vmem:[#allocation10 + $0x28] sm:$0xff]
    %v269 = vld [vmem:[#allocation10 + $0x30] sm:$0xff]
    %v270 = vld [vmem:[#allocation10 + $0x38] sm:$0xff]
    %v271 = vld [vmem:[#allocation10 + $0x40] sm:$0xff]
    %v272 = vld [vmem:[#allocation10 + $0x48] sm:$0xff]
    %v273 = vld [vmem:[#allocation10 + $0x50] sm:$0xff]
    %v274 = vld [vmem:[#allocation10 + $0x58] sm:$0xff]
    %v275 = vld [vmem:[#allocation10 + $0x60] sm:$0xff]
    %v276 = vld [vmem:[#allocation10 + $0x68] sm:$0xff]
    %v277 = vld [vmem:[#allocation10 + $0x70] sm:$0xff]
    %v278 = vld [vmem:[#allocation10 + $0x78] sm:$0xff]
    %v279 = vld [vmem:[%s8] sm:$0x1]
    %v281 = vperm.slane %v279, 0
    %283 = vmatpush.msra.mxu0 %v278
    %284 = vmatpush.msra.mxu0 %v277
    %285 = vmatpush.msra.mxu0 %v276
    %286 = vmatpush.msra.mxu0 %v275
    %287 = vmatpush.msra.mxu0 %v274
    %288 = vmatpush.msra.mxu0 %v273
    %289 = vmatpush.msra.mxu0 %v272
    %290 = vmatpush.msra.mxu0 %v271
    %291 = vmatpush.msra.mxu0 %v270
    %292 = vmatpush.msra.mxu0 %v269
    %293 = vmatpush.msra.mxu0 %v268
    %294 = vmatpush.msra.mxu0 %v267
    %295 = vmatpush.msra.mxu0 %v266
    %296 = vmatpush.msra.mxu0 %v265
    %297 = vmatpush.msra.mxu0 %v264
    %298 = vmatpush.msra.mxu0 %v263
    %299 = vmatmul.f32.gmra.mxu0 %v262
    %v300 = vpop.f32.mrf.mxu0
    %v301 = vadd.f32 %v281, %v300
    %302 = vdwg.mxu0
    %v303 = vmax.f32 %v301, 0.0
    %304 = vst [vmem:[#allocation11] sm:$0x3] %v303
    // Predicated region
    $region58: #{tpu_custom_call.1} parent=1 // pred_check
      _
    $region59: #{tpu_custom_call.1} parent=1 // pred_check_branch
      %306 = sbr.rel (0) target = $region61
    $region60: #{tpu_custom_call.1} parent=1 // pred_region
      %308 = vsyncadd [#allocation4], 0
      %s310 = sshll.u32 [#allocation11], 4
      %s311 = int_to_ptr.vmem [resolvable:$true] %s310
      %s312 = sshll.u32 %s9, 4
      %s313 = int_to_ptr.hbm [resolvable:$true] %s312
      %315 = dma.vmem_to_hbm [thread:$0]  %s311, 32, %s313, [#allocation4]
    $region61: #{tpu_custom_call.1} parent=1 // pred_fallthru
      _
    // Predicated region
    $region62: #{tpu_custom_call.1} parent=1 // pred_check
      _
    $region63: #{tpu_custom_call.1} parent=1 // pred_check_branch
      %317 = sbr.rel (0) target = $region65
    $region64: #{tpu_custom_call.1} parent=1 // pred_region
      %319 = dma.done [#allocation4], 32
    $region65: #{tpu_custom_call.1} parent=1 // pred_fallthru
      _
    %320 = vsyncpa [#allocation3], 1
    %321 = vsyncpa [#allocation6], 1
    %322 = vsyncpa [#allocation9], 1
    %323 = vsyncpa [#allocation4], 1

</llo_original>
